<compile_context>
chip_gen: v5e
topology: v5e:2x2
jax: 0.10.0
libtpu: 0.0.40
codegen_flags: <defaults>
</compile_context>

<pallas_src>
import functools

import jax
import jax.numpy as jnp
from jax.experimental import pallas as pl
from jax.experimental.pallas import tpu as pltpu

_LANE = 128


def _round_up(x: int, m: int) -> int:
    return ((x + m - 1) // m) * m


def _vmem_capacity_bytes() -> int:
    """Generation-aware VMEM capacity (64 MiB v7x, 128 MiB v5e/v6e)."""
    try:
        info = pltpu.get_tpu_info()
        cap = getattr(info, "vmem_capacity_bytes", None)
        if cap:
            return int(cap)
    except Exception:
        pass
    return 64 << 20  # conservative (v7x per-TC) fallback


def _fused_mlp_kernel(*refs, num_layers, feat_p):
    """One batch tile of the whole MLP.

    refs layout:
      [0]                      x tile (VMEM, compute dtype)
      [1 .. 2L]                w_hbm_0, b_hbm_0, ..., w_hbm_{L-1}, b_hbm_{L-1}   (HBM)
      [1 + 2L]                 output tile (VMEM)
      [2 + 2L .. 1 + 4L]       w_vmem_0, b_vmem_0, ...                           (scratch)
      [2 + 4L], [3 + 4L]       activation ping-pong scratch
      [4 + 4L]                 DMA semaphores, shape (2L,)
    """
    L = num_layers
    x_ref = refs[0]
    w_hbm = [refs[1 + 2 * l] for l in range(L)]
    b_hbm = [refs[2 + 2 * l] for l in range(L)]
    o_ref = refs[1 + 2 * L]
    base = 2 + 2 * L
    w_vm = [refs[base + 2 * l] for l in range(L)]
    b_vm = [refs[base + 2 * l + 1] for l in range(L)]
    act = (refs[base + 2 * L], refs[base + 2 * L + 1])
    sems = refs[base + 2 * L + 2]

    first = pl.program_id(0) == 0

    # Issue every layer's weight/bias DMA up-front on the first grid step.
    # The VMEM scratch persists across batch tiles, so weights stay resident
    # (single-buffered) for the rest of the grid; later-layer DMAs overlap the
    # earlier-layer matmuls below.
    @pl.when(first)
    def _start_all():
        for l in range(L):
            pltpu.make_async_copy(w_hbm[l], w_vm[l], sems.at[2 * l]).start()
            pltpu.make_async_copy(b_hbm[l], b_vm[l], sems.at[2 * l + 1]).start()

    h = x_ref[...]  # already in compute dtype (bf16 or f32), no cast needed
    for l in range(L):
        # Only wait for THIS layer's weights right before using them.
        @pl.when(first)
        def _wait(l=l):
            pltpu.make_async_copy(w_hbm[l], w_vm[l], sems.at[2 * l]).wait()
            pltpu.make_async_copy(b_hbm[l], b_vm[l], sems.at[2 * l + 1]).wait()

        acc = jnp.dot(h, w_vm[l][...], preferred_element_type=jnp.float32)
        acc = acc + b_vm[l][...]          # bias add + ReLU kept in f32 (v5e-safe)
        if l < L - 1:                     # ReLU on all but the final Linear
            acc = jnp.maximum(acc, 0.0)
            width = feat_p[l + 1]
            buf = act[l & 1]
            buf[:, :width] = acc.astype(buf.dtype)   # stage through VMEM scratch
            h = buf[:, :width]
        else:
            o_ref[...] = acc.astype(o_ref.dtype)


def quant_mlp_forward(params, x, *, batch_tile=256, use_bf16_mxu=True):
    """Fused float-path forward of QuantMLP.

    params: list of (w_t, b) with w_t shaped (in_features, out_features)
            (i.e. the torch Linear weight already transposed).
    x:      (batch, in_features)
    """
    num_layers = len(params)
    B, K = x.shape
    feat = [K] + [w.shape[1] for (w, _) in params]
    feat_p = [_round_up(d, _LANE) for d in feat]
    out_p = feat_p[-1]

    compute_dtype = jnp.bfloat16 if use_bf16_mxu else jnp.float32
    c_item = jnp.dtype(compute_dtype).itemsize
    out_dtype = x.dtype
    o_item = jnp.dtype(out_dtype).itemsize

    # Batch tiling: sublane-aligned tile (16 rows for bf16 packing, 8 for f32),
    # batch padded to a multiple of it.
    sub = 16 if c_item == 2 else 8
    Bs = _round_up(B, sub)
    tm = min(Bs, _round_up(batch_tile, sub))
    Bp = _round_up(B, tm)
    n_tiles = Bp // tm

    # Zero-pad input (exact: pad rows/cols are zero through Linear+ReLU).
    x_p = jnp.zeros((Bp, feat_p[0]), compute_dtype).at[:B, :K].set(
        x.astype(compute_dtype))

    hbm_inputs = []
    weight_scratch = []
    weight_bytes = 0
    for li, (w, b) in enumerate(params):
        kin, nout = w.shape
        kp, np_ = feat_p[li], feat_p[li + 1]
        w_p = jnp.zeros((kp, np_), compute_dtype).at[:kin, :nout].set(
            w.astype(compute_dtype))
        b_p = jnp.zeros((1, np_), jnp.float32).at[0, :nout].set(
            b.astype(jnp.float32))
        hbm_inputs += [w_p, b_p]
        weight_scratch += [pltpu.VMEM((kp, np_), compute_dtype),
                           pltpu.VMEM((1, np_), jnp.float32)]
        weight_bytes += kp * np_ * c_item + np_ * 4

    # Activation ping-pong scratch sized for the widest intermediate layer.
    maxF = max(feat_p[1:num_layers]) if num_layers > 1 else _LANE

    in_specs = ([pl.BlockSpec((tm, feat_p[0]), lambda i: (i, 0))]
                + [pl.BlockSpec(memory_space=pl.ANY)] * (2 * num_layers))
    out_specs = pl.BlockSpec((tm, out_p), lambda i: (i, 0))
    scratch_shapes = (weight_scratch
                      + [pltpu.VMEM((tm, maxF), compute_dtype),
                         pltpu.VMEM((tm, maxF), compute_dtype),
                         pltpu.SemaphoreType.DMA((2 * num_layers,))])

    # Honest VMEM budget: single-copy resident weights (manual DMA scratch) +
    # double-buffered x/out tiles (auto pipeline) + activation scratch + headroom.
    io_bytes = 2 * tm * feat_p[0] * c_item + 2 * tm * out_p * o_item
    act_bytes = 2 * tm * maxF * c_item
    needed = weight_bytes + io_bytes + act_bytes + (2 << 20)

    vmem_cap = _vmem_capacity_bytes()
    if needed > vmem_cap - (4 << 20):
        # TODO(synk): K/N-tiled emit_pipeline fallback for weights > VMEM.
        raise NotImplementedError(
            "QuantMLP weights too large for single-pass VMEM residency "
            f"(need {needed >> 20} MiB, VMEM {vmem_cap >> 20} MiB)")
    vmem_limit = int(max(16 << 20, min(vmem_cap, needed + (4 << 20))))

    flops = 2 * Bp * sum(feat_p[i] * feat_p[i + 1] for i in range(num_layers))
    bytes_accessed = (x_p.size * c_item + weight_bytes + Bp * out_p * o_item)

    kernel = functools.partial(_fused_mlp_kernel,
                               num_layers=num_layers,
                               feat_p=tuple(feat_p))
    y_p = pl.pallas_call(
        kernel,
        out_shape=jax.ShapeDtypeStruct((Bp, out_p), out_dtype),
        grid_spec=pltpu.PrefetchScalarGridSpec(
            num_scalar_prefetch=0,
            grid=(n_tiles,),
            in_specs=in_specs,
            out_specs=out_specs,
            scratch_shapes=scratch_shapes,
        ),
        compiler_params=pltpu.CompilerParams(
            # "arbitrary": the step-0 weight-DMA guard requires one core to
            # walk the whole grid (see module docstring).
            dimension_semantics=("arbitrary",),
            vmem_limit_bytes=vmem_limit,
        ),
        cost_estimate=pl.CostEstimate(
            flops=flops, transcendentals=0, bytes_accessed=bytes_accessed),
    )(x_p, *hbm_inputs)

    # Strip batch / feature padding.
    return y_p[:B, :feat[-1]]


def init_linear_params(key, in_features, out_features, dtype=jnp.float32):
    """Mimic torch.nn.Linear default init: U(-1/sqrt(in), 1/sqrt(in))."""
    kw, kb = jax.random.split(key)
    bound = 1.0 / jnp.sqrt(jnp.asarray(in_features, dtype))
    # torch weight is (out, in); store transposed (in, out) for the kernel.
    w_t = jax.random.uniform(
        kw, (in_features, out_features), dtype, minval=-bound, maxval=bound)
    b = jax.random.uniform(
        kb, (out_features,), dtype, minval=-bound, maxval=bound)
    return w_t, b


def quant_mlp_init(key, in_features, hidden_size, out_features,
                   num_hidden_layers):
    """Build the parameter list matching QuantMLP.__init__ layer stack."""
    params = []
    keys = jax.random.split(key, num_hidden_layers + 2)
    params.append(init_linear_params(keys[0], in_features, hidden_size))
    for i in range(num_hidden_layers):
        params.append(init_linear_params(keys[i + 1], hidden_size, hidden_size))
    params.append(init_linear_params(keys[num_hidden_layers + 1],
                                     hidden_size, out_features))
    return params


def reference_forward(params, x):
    h = x
    n = len(params)
    for idx, (w_t, b) in enumerate(params):
        h = h @ w_t + b
        if idx < n - 1:
            h = jnp.maximum(h, 0.0)
    return h


if __name__ == "__main__":
    key = jax.random.PRNGKey(0)
    k_params, k_x = jax.random.split(key)

    batch = 8
    in_features = 16
    hidden_size = 32
    out_features = 8
    num_hidden_layers = 1

    params = quant_mlp_init(
        k_params, in_features, hidden_size, out_features, num_hidden_layers)
    x = jax.random.normal(k_x, (batch, in_features), jnp.float32)

    y_ref = reference_forward(params, x)

    # f32 MXU path: bit-level parity with the f32 reference.
    fwd_f32 = jax.jit(functools.partial(quant_mlp_forward, use_bf16_mxu=False))
    y32 = jax.block_until_ready(fwd_f32(params, x))

    # Default bf16-MXU path: bf16 weights/activations, f32 accumulation.
    fwd_bf16 = jax.jit(quant_mlp_forward)
    y16 = jax.block_until_ready(fwd_bf16(params, x))

    assert y32.shape == (batch, out_features)
    assert y16.shape == (batch, out_features)
    assert jnp.allclose(y32, y_ref, atol=1e-5, rtol=1e-5)
    assert jnp.allclose(y16.astype(jnp.float32), y_ref, atol=5e-2, rtol=5e-2)

    print("KERNEL_OK")
</pallas_src>

<mosaic_0001>
module attributes {stable_mosaic.version = 11 : i64} {
  func.func @_fused_mlp_kernel(%arg0: i32, %arg1: memref<8x128xf32, #tpu.memory_space<vmem>>, %arg2: memref<128x128xf32, #tpu.memory_space<any>>, %arg3: memref<1x128xf32, #tpu.memory_space<any>>, %arg4: memref<128x128xf32, #tpu.memory_space<any>>, %arg5: memref<1x128xf32, #tpu.memory_space<any>>, %arg6: memref<128x128xf32, #tpu.memory_space<any>>, %arg7: memref<1x128xf32, #tpu.memory_space<any>>, %arg8: memref<8x128xf32, #tpu.memory_space<vmem>>, %arg9: memref<128x128xf32, #tpu.memory_space<vmem>>, %arg10: memref<1x128xf32, #tpu.memory_space<vmem>>, %arg11: memref<128x128xf32, #tpu.memory_space<vmem>>, %arg12: memref<1x128xf32, #tpu.memory_space<vmem>>, %arg13: memref<128x128xf32, #tpu.memory_space<vmem>>, %arg14: memref<1x128xf32, #tpu.memory_space<vmem>>, %arg15: memref<8x128xf32, #tpu.memory_space<vmem>>, %arg16: memref<8x128xf32, #tpu.memory_space<vmem>>, %arg17: memref<6x!tpu.dma_semaphore, #tpu.memory_space<semaphore_mem>>) attributes {dimension_semantics = [#tpu.dimension_semantics<arbitrary>], iteration_bounds = array<i64: 1>, scalar_prefetch = 0 : i64, scratch_operands = 9 : i64, tpu.core_type = #tpu.core_type<tc>, window_params = [{transform_indices = @transform_0, window_bounds = array<i64: 8, 128>}, {}, {}, {}, {}, {}, {}, {transform_indices = @transform_7, window_bounds = array<i64: 8, 128>}]} {
    %c0_i32 = arith.constant 0 : i32
    %0 = arith.cmpi eq, %arg0, %c0_i32 : i32
    %1 = arith.extui %0 : i1 to i32
    %c0_i32_0 = arith.constant 0 : i32
    %2 = arith.cmpi ne, %1, %c0_i32_0 : i32
    scf.if %2 {
      %c0_i32_31 = arith.constant 0 : i32
      %34 = tpu.memref_slice %arg17[%c0_i32_31] : memref<6x!tpu.dma_semaphore, #tpu.memory_space<semaphore_mem>> -> memref<1x!tpu.dma_semaphore, #tpu.memory_space<semaphore_mem>>
      %35 = tpu.memref_squeeze %34 : memref<1x!tpu.dma_semaphore, #tpu.memory_space<semaphore_mem>> -> memref<!tpu.dma_semaphore, #tpu.memory_space<semaphore_mem>>
      tpu.enqueue_dma source(%arg2 : memref<128x128xf32, #tpu.memory_space<any>>) target(%arg9 : memref<128x128xf32, #tpu.memory_space<vmem>>) target_semaphore(%35 : memref<!tpu.dma_semaphore, #tpu.memory_space<semaphore_mem>>)
      %c1_i32 = arith.constant 1 : i32
      %36 = tpu.memref_slice %arg17[%c1_i32] : memref<6x!tpu.dma_semaphore, #tpu.memory_space<semaphore_mem>> -> memref<1x!tpu.dma_semaphore, #tpu.memory_space<semaphore_mem>>
      %37 = tpu.memref_squeeze %36 : memref<1x!tpu.dma_semaphore, #tpu.memory_space<semaphore_mem>> -> memref<!tpu.dma_semaphore, #tpu.memory_space<semaphore_mem>>
      tpu.enqueue_dma source(%arg3 : memref<1x128xf32, #tpu.memory_space<any>>) target(%arg10 : memref<1x128xf32, #tpu.memory_space<vmem>>) target_semaphore(%37 : memref<!tpu.dma_semaphore, #tpu.memory_space<semaphore_mem>>)
      %c2_i32 = arith.constant 2 : i32
      %38 = tpu.memref_slice %arg17[%c2_i32] : memref<6x!tpu.dma_semaphore, #tpu.memory_space<semaphore_mem>> -> memref<1x!tpu.dma_semaphore, #tpu.memory_space<semaphore_mem>>
      %39 = tpu.memref_squeeze %38 : memref<1x!tpu.dma_semaphore, #tpu.memory_space<semaphore_mem>> -> memref<!tpu.dma_semaphore, #tpu.memory_space<semaphore_mem>>
      tpu.enqueue_dma source(%arg4 : memref<128x128xf32, #tpu.memory_space<any>>) target(%arg11 : memref<128x128xf32, #tpu.memory_space<vmem>>) target_semaphore(%39 : memref<!tpu.dma_semaphore, #tpu.memory_space<semaphore_mem>>)
      %c3_i32 = arith.constant 3 : i32
      %40 = tpu.memref_slice %arg17[%c3_i32] : memref<6x!tpu.dma_semaphore, #tpu.memory_space<semaphore_mem>> -> memref<1x!tpu.dma_semaphore, #tpu.memory_space<semaphore_mem>>
      %41 = tpu.memref_squeeze %40 : memref<1x!tpu.dma_semaphore, #tpu.memory_space<semaphore_mem>> -> memref<!tpu.dma_semaphore, #tpu.memory_space<semaphore_mem>>
      tpu.enqueue_dma source(%arg5 : memref<1x128xf32, #tpu.memory_space<any>>) target(%arg12 : memref<1x128xf32, #tpu.memory_space<vmem>>) target_semaphore(%41 : memref<!tpu.dma_semaphore, #tpu.memory_space<semaphore_mem>>)
      %c4_i32 = arith.constant 4 : i32
      %42 = tpu.memref_slice %arg17[%c4_i32] : memref<6x!tpu.dma_semaphore, #tpu.memory_space<semaphore_mem>> -> memref<1x!tpu.dma_semaphore, #tpu.memory_space<semaphore_mem>>
      %43 = tpu.memref_squeeze %42 : memref<1x!tpu.dma_semaphore, #tpu.memory_space<semaphore_mem>> -> memref<!tpu.dma_semaphore, #tpu.memory_space<semaphore_mem>>
      tpu.enqueue_dma source(%arg6 : memref<128x128xf32, #tpu.memory_space<any>>) target(%arg13 : memref<128x128xf32, #tpu.memory_space<vmem>>) target_semaphore(%43 : memref<!tpu.dma_semaphore, #tpu.memory_space<semaphore_mem>>)
      %c5_i32 = arith.constant 5 : i32
      %44 = tpu.memref_slice %arg17[%c5_i32] : memref<6x!tpu.dma_semaphore, #tpu.memory_space<semaphore_mem>> -> memref<1x!tpu.dma_semaphore, #tpu.memory_space<semaphore_mem>>
      %45 = tpu.memref_squeeze %44 : memref<1x!tpu.dma_semaphore, #tpu.memory_space<semaphore_mem>> -> memref<!tpu.dma_semaphore, #tpu.memory_space<semaphore_mem>>
      tpu.enqueue_dma source(%arg7 : memref<1x128xf32, #tpu.memory_space<any>>) target(%arg14 : memref<1x128xf32, #tpu.memory_space<vmem>>) target_semaphore(%45 : memref<!tpu.dma_semaphore, #tpu.memory_space<semaphore_mem>>)
    } else {
    }
    %c0 = arith.constant 0 : index
    %c0_1 = arith.constant 0 : index
    %3 = vector.load %arg1[%c0, %c0_1] : memref<8x128xf32, #tpu.memory_space<vmem>>, vector<8x128xf32>
    %4 = arith.extui %0 : i1 to i32
    %c0_i32_2 = arith.constant 0 : i32
    %5 = arith.cmpi ne, %4, %c0_i32_2 : i32
    scf.if %5 {
      %c0_i32_31 = arith.constant 0 : i32
      %34 = tpu.memref_slice %arg17[%c0_i32_31] : memref<6x!tpu.dma_semaphore, #tpu.memory_space<semaphore_mem>> -> memref<1x!tpu.dma_semaphore, #tpu.memory_space<semaphore_mem>>
      %35 = tpu.memref_squeeze %34 : memref<1x!tpu.dma_semaphore, #tpu.memory_space<semaphore_mem>> -> memref<!tpu.dma_semaphore, #tpu.memory_space<semaphore_mem>>
      tpu.wait_dma2 semaphore(%35 : memref<!tpu.dma_semaphore, #tpu.memory_space<semaphore_mem>>) src(%arg2 : memref<128x128xf32, #tpu.memory_space<any>>) dst(%arg9 : memref<128x128xf32, #tpu.memory_space<vmem>>)
      %c1_i32 = arith.constant 1 : i32
      %36 = tpu.memref_slice %arg17[%c1_i32] : memref<6x!tpu.dma_semaphore, #tpu.memory_space<semaphore_mem>> -> memref<1x!tpu.dma_semaphore, #tpu.memory_space<semaphore_mem>>
      %37 = tpu.memref_squeeze %36 : memref<1x!tpu.dma_semaphore, #tpu.memory_space<semaphore_mem>> -> memref<!tpu.dma_semaphore, #tpu.memory_space<semaphore_mem>>
      tpu.wait_dma2 semaphore(%37 : memref<!tpu.dma_semaphore, #tpu.memory_space<semaphore_mem>>) src(%arg3 : memref<1x128xf32, #tpu.memory_space<any>>) dst(%arg10 : memref<1x128xf32, #tpu.memory_space<vmem>>)
    } else {
    }
    %c0_3 = arith.constant 0 : index
    %c0_4 = arith.constant 0 : index
    %6 = vector.load %arg9[%c0_3, %c0_4] : memref<128x128xf32, #tpu.memory_space<vmem>>, vector<128x128xf32>
    %cst = arith.constant dense<0.000000e+00> : vector<8x128xf32>
    %7 = tpu.matmul %3, %6, %cst {dimension_numbers = #tpu.dot_dimension_numbers<[1], [0], [0], [1], [0, 0, 1, 1], [], []>} : vector<8x128xf32>, vector<128x128xf32>, vector<8x128xf32> -> vector<8x128xf32>
    %c0_5 = arith.constant 0 : index
    %c0_6 = arith.constant 0 : index
    %8 = vector.load %arg10[%c0_5, %c0_6] : memref<1x128xf32, #tpu.memory_space<vmem>>, vector<1x128xf32>
    %9 = vector.broadcast %8 : vector<1x128xf32> to vector<8x128xf32>
    %10 = arith.addf %7, %9 : vector<8x128xf32>
    %cst_7 = arith.constant 0.000000e+00 : f32
    %11 = vector.broadcast %cst_7 : f32 to vector<8x128xf32>
    %12 = arith.maximumf %10, %11 : vector<8x128xf32>
    %c0_8 = arith.constant 0 : index
    %c0_9 = arith.constant 0 : index
    %13 = vector.load %arg15[%c0_8, %c0_9] : memref<8x128xf32, #tpu.memory_space<vmem>>, vector<8x128xf32>
    tpu.vector_store %arg15[%c0_8, %c0_9], %12 {strides = array<i32>} : memref<8x128xf32, #tpu.memory_space<vmem>>, vector<8x128xf32>,
    %c0_10 = arith.constant 0 : index
    %c0_11 = arith.constant 0 : index
    %14 = vector.load %arg15[%c0_10, %c0_11] : memref<8x128xf32, #tpu.memory_space<vmem>>, vector<8x128xf32>
    %15 = arith.extui %0 : i1 to i32
    %c0_i32_12 = arith.constant 0 : i32
    %16 = arith.cmpi ne, %15, %c0_i32_12 : i32
    scf.if %16 {
      %c2_i32 = arith.constant 2 : i32
      %34 = tpu.memref_slice %arg17[%c2_i32] : memref<6x!tpu.dma_semaphore, #tpu.memory_space<semaphore_mem>> -> memref<1x!tpu.dma_semaphore, #tpu.memory_space<semaphore_mem>>
      %35 = tpu.memref_squeeze %34 : memref<1x!tpu.dma_semaphore, #tpu.memory_space<semaphore_mem>> -> memref<!tpu.dma_semaphore, #tpu.memory_space<semaphore_mem>>
      tpu.wait_dma2 semaphore(%35 : memref<!tpu.dma_semaphore, #tpu.memory_space<semaphore_mem>>) src(%arg4 : memref<128x128xf32, #tpu.memory_space<any>>) dst(%arg11 : memref<128x128xf32, #tpu.memory_space<vmem>>)
      %c3_i32 = arith.constant 3 : i32
      %36 = tpu.memref_slice %arg17[%c3_i32] : memref<6x!tpu.dma_semaphore, #tpu.memory_space<semaphore_mem>> -> memref<1x!tpu.dma_semaphore, #tpu.memory_space<semaphore_mem>>
      %37 = tpu.memref_squeeze %36 : memref<1x!tpu.dma_semaphore, #tpu.memory_space<semaphore_mem>> -> memref<!tpu.dma_semaphore, #tpu.memory_space<semaphore_mem>>
      tpu.wait_dma2 semaphore(%37 : memref<!tpu.dma_semaphore, #tpu.memory_space<semaphore_mem>>) src(%arg5 : memref<1x128xf32, #tpu.memory_space<any>>) dst(%arg12 : memref<1x128xf32, #tpu.memory_space<vmem>>)
    } else {
    }
    %c0_13 = arith.constant 0 : index
    %c0_14 = arith.constant 0 : index
    %17 = vector.load %arg11[%c0_13, %c0_14] : memref<128x128xf32, #tpu.memory_space<vmem>>, vector<128x128xf32>
    %cst_15 = arith.constant dense<0.000000e+00> : vector<8x128xf32>
    %18 = tpu.matmul %14, %17, %cst_15 {dimension_numbers = #tpu.dot_dimension_numbers<[1], [0], [0], [1], [0, 0, 1, 1], [], []>} : vector<8x128xf32>, vector<128x128xf32>, vector<8x128xf32> -> vector<8x128xf32>
    %c0_16 = arith.constant 0 : index
    %c0_17 = arith.constant 0 : index
    %19 = vector.load %arg12[%c0_16, %c0_17] : memref<1x128xf32, #tpu.memory_space<vmem>>, vector<1x128xf32>
    %20 = vector.broadcast %19 : vector<1x128xf32> to vector<8x128xf32>
    %21 = arith.addf %18, %20 : vector<8x128xf32>
    %cst_18 = arith.constant 0.000000e+00 : f32
    %22 = vector.broadcast %cst_18 : f32 to vector<8x128xf32>
    %23 = arith.maximumf %21, %22 : vector<8x128xf32>
    %c0_19 = arith.constant 0 : index
    %c0_20 = arith.constant 0 : index
    %24 = vector.load %arg16[%c0_19, %c0_20] : memref<8x128xf32, #tpu.memory_space<vmem>>, vector<8x128xf32>
    tpu.vector_store %arg16[%c0_19, %c0_20], %23 {strides = array<i32>} : memref<8x128xf32, #tpu.memory_space<vmem>>, vector<8x128xf32>,
    %c0_21 = arith.constant 0 : index
    %c0_22 = arith.constant 0 : index
    %25 = vector.load %arg16[%c0_21, %c0_22] : memref<8x128xf32, #tpu.memory_space<vmem>>, vector<8x128xf32>
    %26 = arith.extui %0 : i1 to i32
    %c0_i32_23 = arith.constant 0 : i32
    %27 = arith.cmpi ne, %26, %c0_i32_23 : i32
    scf.if %27 {
      %c4_i32 = arith.constant 4 : i32
      %34 = tpu.memref_slice %arg17[%c4_i32] : memref<6x!tpu.dma_semaphore, #tpu.memory_space<semaphore_mem>> -> memref<1x!tpu.dma_semaphore, #tpu.memory_space<semaphore_mem>>
      %35 = tpu.memref_squeeze %34 : memref<1x!tpu.dma_semaphore, #tpu.memory_space<semaphore_mem>> -> memref<!tpu.dma_semaphore, #tpu.memory_space<semaphore_mem>>
      tpu.wait_dma2 semaphore(%35 : memref<!tpu.dma_semaphore, #tpu.memory_space<semaphore_mem>>) src(%arg6 : memref<128x128xf32, #tpu.memory_space<any>>) dst(%arg13 : memref<128x128xf32, #tpu.memory_space<vmem>>)
      %c5_i32 = arith.constant 5 : i32
      %36 = tpu.memref_slice %arg17[%c5_i32] : memref<6x!tpu.dma_semaphore, #tpu.memory_space<semaphore_mem>> -> memref<1x!tpu.dma_semaphore, #tpu.memory_space<semaphore_mem>>
      %37 = tpu.memref_squeeze %36 : memref<1x!tpu.dma_semaphore, #tpu.memory_space<semaphore_mem>> -> memref<!tpu.dma_semaphore, #tpu.memory_space<semaphore_mem>>
      tpu.wait_dma2 semaphore(%37 : memref<!tpu.dma_semaphore, #tpu.memory_space<semaphore_mem>>) src(%arg7 : memref<1x128xf32, #tpu.memory_space<any>>) dst(%arg14 : memref<1x128xf32, #tpu.memory_space<vmem>>)
    } else {
    }
    %c0_24 = arith.constant 0 : index
    %c0_25 = arith.constant 0 : index
    %28 = vector.load %arg13[%c0_24, %c0_25] : memref<128x128xf32, #tpu.memory_space<vmem>>, vector<128x128xf32>
    %cst_26 = arith.constant dense<0.000000e+00> : vector<8x128xf32>
    %29 = tpu.matmul %25, %28, %cst_26 {dimension_numbers = #tpu.dot_dimension_numbers<[1], [0], [0], [1], [0, 0, 1, 1], [], []>} : vector<8x128xf32>, vector<128x128xf32>, vector<8x128xf32> -> vector<8x128xf32>
    %c0_27 = arith.constant 0 : index
    %c0_28 = arith.constant 0 : index
    %30 = vector.load %arg14[%c0_27, %c0_28] : memref<1x128xf32, #tpu.memory_space<vmem>>, vector<1x128xf32>
    %31 = vector.broadcast %30 : vector<1x128xf32> to vector<8x128xf32>
    %32 = arith.addf %29, %31 : vector<8x128xf32>
    %c0_29 = arith.constant 0 : index
    %c0_30 = arith.constant 0 : index
    %33 = vector.load %arg8[%c0_29, %c0_30] : memref<8x128xf32, #tpu.memory_space<vmem>>, vector<8x128xf32>
    tpu.vector_store %arg8[%c0_29, %c0_30], %32 {strides = array<i32>} : memref<8x128xf32, #tpu.memory_space<vmem>>, vector<8x128xf32>,
    return
  }
  func.func @transform_0(%arg0: i32) -> (i32, i32) {
    %c0_i32 = arith.constant 0 : i32
    %c0_i32_0 = arith.constant 0 : i32
    return %arg0, %c0_i32 : i32, i32
  }
  func.func @transform_7(%arg0: i32) -> (i32, i32) {
    %c0_i32 = arith.constant 0 : i32
    %c0_i32_0 = arith.constant 0 : i32
    return %arg0, %c0_i32 : i32, i32
  }
}

</mosaic_0001>

<llo_original>
// kernel: quant_mlp_forward.1
$region0: #{quant_mlp_forward.1}
  #allocation0 [shape = 'u32[]', space=smem, size = 0x4, offset = 0x4, fixed_abs, tag = 'smem constant byte address 0x4 - core index']
  #allocation1 [shape = 'u32[72,128]{1,0:T(1,128)}', space=vmem, size = 0x9000, scoped, tag = 'internal scratch']
  #allocation2 [shape = 'f32[128,128]{1,0:T(8,128)}', space=vmem, size = 0x10000, scoped, tag = 'scratch operand']
  #allocation3 [shape = 'f32[1,128]{1,0:T(1,128)}', space=vmem, size = 0x200, scoped, tag = 'scratch operand']
  #allocation4 [shape = 'f32[128,128]{1,0:T(8,128)}', space=vmem, size = 0x10000, scoped, tag = 'scratch operand']
  #allocation5 [shape = 'f32[1,128]{1,0:T(1,128)}', space=vmem, size = 0x200, scoped, tag = 'scratch operand']
  #allocation6 [shape = 'f32[128,128]{1,0:T(8,128)}', space=vmem, size = 0x10000, scoped, tag = 'scratch operand']
  #allocation7 [shape = 'f32[1,128]{1,0:T(1,128)}', space=vmem, size = 0x200, scoped, tag = 'scratch operand']
  #allocation8 [shape = 'f32[8,128]{1,0:T(8,128)}', space=vmem, size = 0x1000, scoped, tag = 'scratch operand']
  #allocation9 [shape = 'f32[8,128]{1,0:T(8,128)}', space=vmem, size = 0x1000, scoped, tag = 'scratch operand']
  #allocation10 [shape = 's32[6]{0}', space=sflag, size = 0x18, scoped, tag = 'scratch operand']
  #allocation13 [shape = 's32[]', space=sflag, size = 0x4, offset = 0, fixed_abs, tag = 'sflag constant byte address 0x0 - dummy sync flag']
  #allocation14 [shape = 's32[]', space=sflag, size = 0x4, offset = 0, fixed_abs, tag = 'sflag constant byte address 0x0 - dummy sync flag']
  #allocation15 [shape = 's32[]', space=sflag, size = 0x4, offset = 0, fixed_abs, tag = 'sflag constant byte address 0x0 - dummy sync flag']
  #allocation16 [shape = 's32[]', space=sflag, size = 0x4, offset = 0, fixed_abs, tag = 'sflag constant byte address 0x0 - dummy sync flag']
  #allocation17 [shape = 's32[]', space=sflag, size = 0x4, offset = 0, fixed_abs, tag = 'sflag constant byte address 0x0 - dummy sync flag']
  #allocation18 [shape = 's32[]', space=sflag, size = 0x4, offset = 0, fixed_abs, tag = 'sflag constant byte address 0x0 - dummy sync flag']
  %s0 = inlined_call_operand.vmem [shape: f32[8,128], index: 0, kind: input, shape index: {}]
  %s1 = inlined_call_operand.vmem [shape: f32[128,128], index: 1, kind: input, shape index: {}]
  %s2 = inlined_call_operand.vmem [shape: f32[1,128], index: 2, kind: input, shape index: {}]
  %s3 = inlined_call_operand.vmem [shape: f32[128,128], index: 3, kind: input, shape index: {}]
  %s4 = inlined_call_operand.vmem [shape: f32[1,128], index: 4, kind: input, shape index: {}]
  %s5 = inlined_call_operand.vmem [shape: f32[128,128], index: 5, kind: input, shape index: {}]
  %s6 = inlined_call_operand.vmem [shape: f32[1,128], index: 6, kind: input, shape index: {}]
  %s7 = inlined_call_operand.hbm [shape: f32[8,128], index: 7, kind: output, shape index: {}]
  %s8 = sld [smem:[#allocation0]]
  $region177: #{quant_mlp_forward.1} parent=0
    _
  %s10 = ssub.s32 1, %s8
  %s11 = scalar_select 0, %s10, %s8
  $region1: #{quant_mlp_forward.1} parent=0
    #allocation11 [shape = 'u8[4096]{0}', space=vmem, size = 0x1000, scoped, tag = 'output window, operand 0, single buffered']
    #allocation12 [shape = 's32[1]{0}', space=sflag, size = 0x4, scoped, tag = 'scoped memory for quant_mlp_forward.1']
    %12 = vsyncpa [#allocation12], 0
    // Predicated region
    $region2: #{quant_mlp_forward.1} parent=1 // pred_check
      _
    $region3: #{quant_mlp_forward.1} parent=1 // pred_check_branch
      %14 = sbr.rel (0) target = $region5
    $region4: #{quant_mlp_forward.1} parent=1 // pred_region
      _
    $region5: #{quant_mlp_forward.1} parent=1 // pred_fallthru
      _
    %p15 = scmp.eq.s32.totalorder 0, 0
    // Predicated region
    $region6: #{quant_mlp_forward.1} parent=1 // pred_check
      %p16 = pneg %p15
    $region7: #{quant_mlp_forward.1} parent=1 // pred_check_branch
      %18 = sbr.rel (%p16) target = $region9
    $region8: #{quant_mlp_forward.1} parent=1 // pred_region
      // Predicated region
      $region10: #{quant_mlp_forward.1} parent=8 // pred_check
        _
      $region11: #{quant_mlp_forward.1} parent=8 // pred_check_branch
        %20 = sbr.rel (0) target = $region13
      $region12: #{quant_mlp_forward.1} parent=8 // pred_region
        loop: start=0, step=1, limit=1
        $region14: #{quant_mlp_forward.1} parent=12 // loop_pre_header
          _
        $region15: #{quant_mlp_forward.1} parent=12 // loop_header
          %s22 = sphi 0, %s26
          %p23 = scmp.ge.s32.totalorder %s22, 1
          %s27 = sphi %s1, %s1
          %s28 = sphi [#allocation2], [#allocation2]
        $region16: #{quant_mlp_forward.1} parent=12 // loop_header_branch
          %25 = sbr.rel (%p23) target = $region20
        $region17: #{quant_mlp_forward.1} parent=12 // loop_body
          %v29 = vld [vmem:[%s27] sm:$0xff]
          %30 = vst [vmem:[%s28] sm:$0xff] %v29
          %v31 = vld [vmem:[%s27 + $0x8] sm:$0xff]
          %32 = vst [vmem:[%s28 + $0x8] sm:$0xff] %v31
          %v33 = vld [vmem:[%s27 + $0x10] sm:$0xff]
          %34 = vst [vmem:[%s28 + $0x10] sm:$0xff] %v33
          %v35 = vld [vmem:[%s27 + $0x18] sm:$0xff]
          %36 = vst [vmem:[%s28 + $0x18] sm:$0xff] %v35
          %v37 = vld [vmem:[%s27 + $0x20] sm:$0xff]
          %38 = vst [vmem:[%s28 + $0x20] sm:$0xff] %v37
          %v39 = vld [vmem:[%s27 + $0x28] sm:$0xff]
          %40 = vst [vmem:[%s28 + $0x28] sm:$0xff] %v39
          %v41 = vld [vmem:[%s27 + $0x30] sm:$0xff]
          %42 = vst [vmem:[%s28 + $0x30] sm:$0xff] %v41
          %v43 = vld [vmem:[%s27 + $0x38] sm:$0xff]
          %44 = vst [vmem:[%s28 + $0x38] sm:$0xff] %v43
          %v45 = vld [vmem:[%s27 + $0x40] sm:$0xff]
          %46 = vst [vmem:[%s28 + $0x40] sm:$0xff] %v45
          %v47 = vld [vmem:[%s27 + $0x48] sm:$0xff]
          %48 = vst [vmem:[%s28 + $0x48] sm:$0xff] %v47
          %v49 = vld [vmem:[%s27 + $0x50] sm:$0xff]
          %50 = vst [vmem:[%s28 + $0x50] sm:$0xff] %v49
          %v51 = vld [vmem:[%s27 + $0x58] sm:$0xff]
          %52 = vst [vmem:[%s28 + $0x58] sm:$0xff] %v51
          %v53 = vld [vmem:[%s27 + $0x60] sm:$0xff]
          %54 = vst [vmem:[%s28 + $0x60] sm:$0xff] %v53
          %v55 = vld [vmem:[%s27 + $0x68] sm:$0xff]
          %56 = vst [vmem:[%s28 + $0x68] sm:$0xff] %v55
          %v57 = vld [vmem:[%s27 + $0x70] sm:$0xff]
          %58 = vst [vmem:[%s28 + $0x70] sm:$0xff] %v57
          %v59 = vld [vmem:[%s27 + $0x78] sm:$0xff]
          %60 = vst [vmem:[%s28 + $0x78] sm:$0xff] %v59
        $region18: #{quant_mlp_forward.1} parent=12 // loop_footer
          %s26 = sadd.s32 1, %s22
        $region19: #{quant_mlp_forward.1} parent=12 // loop_footer_branch
          %21 = sbr.rel target = $region15
        $region20: #{quant_mlp_forward.1} parent=12 // loop_exit
          _
      $region13: #{quant_mlp_forward.1} parent=8 // pred_fallthru
        _
      // Predicated region
      $region21: #{quant_mlp_forward.1} parent=8 // pred_check
        _
      $region22: #{quant_mlp_forward.1} parent=8 // pred_check_branch
        %62 = sbr.rel target = $region24
      $region23: #{quant_mlp_forward.1} parent=8 // pred_region
        _
      $region24: #{quant_mlp_forward.1} parent=8 // pred_fallthru
        _
      // Predicated region
      $region25: #{quant_mlp_forward.1} parent=8 // pred_check
        _
      $region26: #{quant_mlp_forward.1} parent=8 // pred_check_branch
        %65 = sbr.rel (0) target = $region28
      $region27: #{quant_mlp_forward.1} parent=8 // pred_region
        %66 = vsyncadd [#allocation10], 2048
      $region28: #{quant_mlp_forward.1} parent=8 // pred_fallthru
        _
      %s67 = scalar_lea.sflag [#allocation10], 1
      // Predicated region
      $region29: #{quant_mlp_forward.1} parent=8 // pred_check
        _
      $region30: #{quant_mlp_forward.1} parent=8 // pred_check_branch
        %69 = sbr.rel target = $region32
      $region31: #{quant_mlp_forward.1} parent=8 // pred_region
        // Predicated region
        $region44: #{quant_mlp_forward.1} parent=31 // pred_check
          _
        $region45: #{quant_mlp_forward.1} parent=31 // pred_check_branch
          %85 = sbr.rel (0) target = $region47
        $region46: #{quant_mlp_forward.1} parent=31 // pred_region
          %s87 = ssub.s32 2, 1
          loop: start=0, step=1, limit=1
          $region48: #{quant_mlp_forward.1} parent=46 // loop_pre_header
            _
          $region49: #{quant_mlp_forward.1} parent=46 // loop_header
            %s89 = sphi 0, %s93
            %p90 = scmp.ge.s32.totalorder %s89, 1
            %s94 = sphi %s2, %s2
            %s95 = sphi [#allocation3], [#allocation3]
          $region50: #{quant_mlp_forward.1} parent=46 // loop_header_branch
            %92 = sbr.rel (%p90) target = $region54
          $region51: #{quant_mlp_forward.1} parent=46 // loop_body
            %v96 = vld [vmem:[%s94] sm:%s87]
            %97 = vst [vmem:[%s95] sm:%s87] %v96
          $region52: #{quant_mlp_forward.1} parent=46 // loop_footer
            %s93 = sadd.s32 1, %s89
          $region53: #{quant_mlp_forward.1} parent=46 // loop_footer_branch
            %88 = sbr.rel target = $region49
          $region54: #{quant_mlp_forward.1} parent=46 // loop_exit
            _
        $region47: #{quant_mlp_forward.1} parent=31 // pred_fallthru
          _
      $region32: #{quant_mlp_forward.1} parent=8 // pred_fallthru
        _
      // Predicated region
      $region33: #{quant_mlp_forward.1} parent=8 // pred_check
        _
      $region34: #{quant_mlp_forward.1} parent=8 // pred_check_branch
        %71 = sbr.rel (0) target = $region36
      $region35: #{quant_mlp_forward.1} parent=8 // pred_region
        %s73 = ssub.s32 2, 1
        loop: start=0, step=1, limit=1
        $region37: #{quant_mlp_forward.1} parent=35 // loop_pre_header
          _
        $region38: #{quant_mlp_forward.1} parent=35 // loop_header
          %s75 = sphi 0, %s79
          %p76 = scmp.ge.s32.totalorder %s75, 1
          %s80 = sphi %s2, %s2
          %s81 = sphi [#allocation3], [#allocation3]
        $region39: #{quant_mlp_forward.1} parent=35 // loop_header_branch
          %78 = sbr.rel (%p76) target = $region43
        $region40: #{quant_mlp_forward.1} parent=35 // loop_body
          %v82 = vld [vmem:[%s80] sm:%s73]
          %83 = vst [vmem:[%s81] sm:%s73] %v82
        $region41: #{quant_mlp_forward.1} parent=35 // loop_footer
          %s79 = sadd.s32 1, %s75
        $region42: #{quant_mlp_forward.1} parent=35 // loop_footer_branch
          %74 = sbr.rel target = $region38
        $region43: #{quant_mlp_forward.1} parent=35 // loop_exit
          _
      $region36: #{quant_mlp_forward.1} parent=8 // pred_fallthru
        _
      // Predicated region
      $region55: #{quant_mlp_forward.1} parent=8 // pred_check
        _
      $region56: #{quant_mlp_forward.1} parent=8 // pred_check_branch
        %100 = sbr.rel (0) target = $region58
      $region57: #{quant_mlp_forward.1} parent=8 // pred_region
        %101 = vsyncadd %s67, 16
      $region58: #{quant_mlp_forward.1} parent=8 // pred_fallthru
        _
      %s102 = scalar_lea.sflag [#allocation10], 2
      // Predicated region
      $region59: #{quant_mlp_forward.1} parent=8 // pred_check
        _
      $region60: #{quant_mlp_forward.1} parent=8 // pred_check_branch
        %104 = sbr.rel (0) target = $region62
      $region61: #{quant_mlp_forward.1} parent=8 // pred_region
        loop: start=0, step=1, limit=1
        $region63: #{quant_mlp_forward.1} parent=61 // loop_pre_header
          _
        $region64: #{quant_mlp_forward.1} parent=61 // loop_header
          %s106 = sphi 0, %s110
          %p107 = scmp.ge.s32.totalorder %s106, 1
          %s111 = sphi %s3, %s3
          %s112 = sphi [#allocation4], [#allocation4]
        $region65: #{quant_mlp_forward.1} parent=61 // loop_header_branch
          %109 = sbr.rel (%p107) target = $region69
        $region66: #{quant_mlp_forward.1} parent=61 // loop_body
          %v113 = vld [vmem:[%s111] sm:$0xff]
          %114 = vst [vmem:[%s112] sm:$0xff] %v113
          %v115 = vld [vmem:[%s111 + $0x8] sm:$0xff]
          %116 = vst [vmem:[%s112 + $0x8] sm:$0xff] %v115
          %v117 = vld [vmem:[%s111 + $0x10] sm:$0xff]
          %118 = vst [vmem:[%s112 + $0x10] sm:$0xff] %v117
          %v119 = vld [vmem:[%s111 + $0x18] sm:$0xff]
          %120 = vst [vmem:[%s112 + $0x18] sm:$0xff] %v119
          %v121 = vld [vmem:[%s111 + $0x20] sm:$0xff]
          %122 = vst [vmem:[%s112 + $0x20] sm:$0xff] %v121
          %v123 = vld [vmem:[%s111 + $0x28] sm:$0xff]
          %124 = vst [vmem:[%s112 + $0x28] sm:$0xff] %v123
          %v125 = vld [vmem:[%s111 + $0x30] sm:$0xff]
          %126 = vst [vmem:[%s112 + $0x30] sm:$0xff] %v125
          %v127 = vld [vmem:[%s111 + $0x38] sm:$0xff]
          %128 = vst [vmem:[%s112 + $0x38] sm:$0xff] %v127
          %v129 = vld [vmem:[%s111 + $0x40] sm:$0xff]
          %130 = vst [vmem:[%s112 + $0x40] sm:$0xff] %v129
          %v131 = vld [vmem:[%s111 + $0x48] sm:$0xff]
          %132 = vst [vmem:[%s112 + $0x48] sm:$0xff] %v131
          %v133 = vld [vmem:[%s111 + $0x50] sm:$0xff]
          %134 = vst [vmem:[%s112 + $0x50] sm:$0xff] %v133
          %v135 = vld [vmem:[%s111 + $0x58] sm:$0xff]
          %136 = vst [vmem:[%s112 + $0x58] sm:$0xff] %v135
          %v137 = vld [vmem:[%s111 + $0x60] sm:$0xff]
          %138 = vst [vmem:[%s112 + $0x60] sm:$0xff] %v137
          %v139 = vld [vmem:[%s111 + $0x68] sm:$0xff]
          %140 = vst [vmem:[%s112 + $0x68] sm:$0xff] %v139
          %v141 = vld [vmem:[%s111 + $0x70] sm:$0xff]
          %142 = vst [vmem:[%s112 + $0x70] sm:$0xff] %v141
          %v143 = vld [vmem:[%s111 + $0x78] sm:$0xff]
          %144 = vst [vmem:[%s112 + $0x78] sm:$0xff] %v143
        $region67: #{quant_mlp_forward.1} parent=61 // loop_footer
          %s110 = sadd.s32 1, %s106
        $region68: #{quant_mlp_forward.1} parent=61 // loop_footer_branch
          %105 = sbr.rel target = $region64
        $region69: #{quant_mlp_forward.1} parent=61 // loop_exit
          _
      $region62: #{quant_mlp_forward.1} parent=8 // pred_fallthru
        _
      // Predicated region
      $region70: #{quant_mlp_forward.1} parent=8 // pred_check
        _
      $region71: #{quant_mlp_forward.1} parent=8 // pred_check_branch
        %146 = sbr.rel target = $region73
      $region72: #{quant_mlp_forward.1} parent=8 // pred_region
        _
      $region73: #{quant_mlp_forward.1} parent=8 // pred_fallthru
        _
      // Predicated region
      $region74: #{quant_mlp_forward.1} parent=8 // pred_check
        _
      $region75: #{quant_mlp_forward.1} parent=8 // pred_check_branch
        %149 = sbr.rel (0) target = $region77
      $region76: #{quant_mlp_forward.1} parent=8 // pred_region
        %150 = vsyncadd %s102, 2048
      $region77: #{quant_mlp_forward.1} parent=8 // pred_fallthru
        _
      %s151 = scalar_lea.sflag [#allocation10], 3
      // Predicated region
      $region78: #{quant_mlp_forward.1} parent=8 // pred_check
        _
      $region79: #{quant_mlp_forward.1} parent=8 // pred_check_branch
        %153 = sbr.rel target = $region81
      $region80: #{quant_mlp_forward.1} parent=8 // pred_region
        // Predicated region
        $region93: #{quant_mlp_forward.1} parent=80 // pred_check
          _
        $region94: #{quant_mlp_forward.1} parent=80 // pred_check_branch
          %169 = sbr.rel (0) target = $region96
        $region95: #{quant_mlp_forward.1} parent=80 // pred_region
          %s171 = ssub.s32 2, 1
          loop: start=0, step=1, limit=1
          $region97: #{quant_mlp_forward.1} parent=95 // loop_pre_header
            _
          $region98: #{quant_mlp_forward.1} parent=95 // loop_header
            %s173 = sphi 0, %s177
            %p174 = scmp.ge.s32.totalorder %s173, 1
            %s178 = sphi %s4, %s4
            %s179 = sphi [#allocation5], [#allocation5]
          $region99: #{quant_mlp_forward.1} parent=95 // loop_header_branch
            %176 = sbr.rel (%p174) target = $region103
          $region100: #{quant_mlp_forward.1} parent=95 // loop_body
            %v180 = vld [vmem:[%s178] sm:%s171]
            %181 = vst [vmem:[%s179] sm:%s171] %v180
          $region101: #{quant_mlp_forward.1} parent=95 // loop_footer
            %s177 = sadd.s32 1, %s173
          $region102: #{quant_mlp_forward.1} parent=95 // loop_footer_branch
            %172 = sbr.rel target = $region98
          $region103: #{quant_mlp_forward.1} parent=95 // loop_exit
            _
        $region96: #{quant_mlp_forward.1} parent=80 // pred_fallthru
          _
      $region81: #{quant_mlp_forward.1} parent=8 // pred_fallthru
        _
      // Predicated region
      $region82: #{quant_mlp_forward.1} parent=8 // pred_check
        _
      $region83: #{quant_mlp_forward.1} parent=8 // pred_check_branch
        %155 = sbr.rel (0) target = $region85
      $region84: #{quant_mlp_forward.1} parent=8 // pred_region
        %s157 = ssub.s32 2, 1
        loop: start=0, step=1, limit=1
        $region86: #{quant_mlp_forward.1} parent=84 // loop_pre_header
          _
        $region87: #{quant_mlp_forward.1} parent=84 // loop_header
          %s159 = sphi 0, %s163
          %p160 = scmp.ge.s32.totalorder %s159, 1
          %s164 = sphi %s4, %s4
          %s165 = sphi [#allocation5], [#allocation5]
        $region88: #{quant_mlp_forward.1} parent=84 // loop_header_branch
          %162 = sbr.rel (%p160) target = $region92
        $region89: #{quant_mlp_forward.1} parent=84 // loop_body
          %v166 = vld [vmem:[%s164] sm:%s157]
          %167 = vst [vmem:[%s165] sm:%s157] %v166
        $region90: #{quant_mlp_forward.1} parent=84 // loop_footer
          %s163 = sadd.s32 1, %s159
        $region91: #{quant_mlp_forward.1} parent=84 // loop_footer_branch
          %158 = sbr.rel target = $region87
        $region92: #{quant_mlp_forward.1} parent=84 // loop_exit
          _
      $region85: #{quant_mlp_forward.1} parent=8 // pred_fallthru
        _
      // Predicated region
      $region104: #{quant_mlp_forward.1} parent=8 // pred_check
        _
      $region105: #{quant_mlp_forward.1} parent=8 // pred_check_branch
        %184 = sbr.rel (0) target = $region107
      $region106: #{quant_mlp_forward.1} parent=8 // pred_region
        %185 = vsyncadd %s151, 16
      $region107: #{quant_mlp_forward.1} parent=8 // pred_fallthru
        _
      %s186 = scalar_lea.sflag [#allocation10], 4
      // Predicated region
      $region108: #{quant_mlp_forward.1} parent=8 // pred_check
        _
      $region109: #{quant_mlp_forward.1} parent=8 // pred_check_branch
        %188 = sbr.rel (0) target = $region111
      $region110: #{quant_mlp_forward.1} parent=8 // pred_region
        loop: start=0, step=1, limit=1
        $region112: #{quant_mlp_forward.1} parent=110 // loop_pre_header
          _
        $region113: #{quant_mlp_forward.1} parent=110 // loop_header
          %s190 = sphi 0, %s194
          %p191 = scmp.ge.s32.totalorder %s190, 1
          %s195 = sphi %s5, %s5
          %s196 = sphi [#allocation6], [#allocation6]
        $region114: #{quant_mlp_forward.1} parent=110 // loop_header_branch
          %193 = sbr.rel (%p191) target = $region118
        $region115: #{quant_mlp_forward.1} parent=110 // loop_body
          %v197 = vld [vmem:[%s195] sm:$0xff]
          %198 = vst [vmem:[%s196] sm:$0xff] %v197
          %v199 = vld [vmem:[%s195 + $0x8] sm:$0xff]
          %200 = vst [vmem:[%s196 + $0x8] sm:$0xff] %v199
          %v201 = vld [vmem:[%s195 + $0x10] sm:$0xff]
          %202 = vst [vmem:[%s196 + $0x10] sm:$0xff] %v201
          %v203 = vld [vmem:[%s195 + $0x18] sm:$0xff]
          %204 = vst [vmem:[%s196 + $0x18] sm:$0xff] %v203
          %v205 = vld [vmem:[%s195 + $0x20] sm:$0xff]
          %206 = vst [vmem:[%s196 + $0x20] sm:$0xff] %v205
          %v207 = vld [vmem:[%s195 + $0x28] sm:$0xff]
          %208 = vst [vmem:[%s196 + $0x28] sm:$0xff] %v207
          %v209 = vld [vmem:[%s195 + $0x30] sm:$0xff]
          %210 = vst [vmem:[%s196 + $0x30] sm:$0xff] %v209
          %v211 = vld [vmem:[%s195 + $0x38] sm:$0xff]
          %212 = vst [vmem:[%s196 + $0x38] sm:$0xff] %v211
          %v213 = vld [vmem:[%s195 + $0x40] sm:$0xff]
          %214 = vst [vmem:[%s196 + $0x40] sm:$0xff] %v213
          %v215 = vld [vmem:[%s195 + $0x48] sm:$0xff]
          %216 = vst [vmem:[%s196 + $0x48] sm:$0xff] %v215
          %v217 = vld [vmem:[%s195 + $0x50] sm:$0xff]
          %218 = vst [vmem:[%s196 + $0x50] sm:$0xff] %v217
          %v219 = vld [vmem:[%s195 + $0x58] sm:$0xff]
          %220 = vst [vmem:[%s196 + $0x58] sm:$0xff] %v219
          %v221 = vld [vmem:[%s195 + $0x60] sm:$0xff]
          %222 = vst [vmem:[%s196 + $0x60] sm:$0xff] %v221
          %v223 = vld [vmem:[%s195 + $0x68] sm:$0xff]
          %224 = vst [vmem:[%s196 + $0x68] sm:$0xff] %v223
          %v225 = vld [vmem:[%s195 + $0x70] sm:$0xff]
          %226 = vst [vmem:[%s196 + $0x70] sm:$0xff] %v225
          %v227 = vld [vmem:[%s195 + $0x78] sm:$0xff]
          %228 = vst [vmem:[%s196 + $0x78] sm:$0xff] %v227
        $region116: #{quant_mlp_forward.1} parent=110 // loop_footer
          %s194 = sadd.s32 1, %s190
        $region117: #{quant_mlp_forward.1} parent=110 // loop_footer_branch
          %189 = sbr.rel target = $region113
        $region118: #{quant_mlp_forward.1} parent=110 // loop_exit
          _
      $region111: #{quant_mlp_forward.1} parent=8 // pred_fallthru
        _
      // Predicated region
      $region119: #{quant_mlp_forward.1} parent=8 // pred_check
        _
      $region120: #{quant_mlp_forward.1} parent=8 // pred_check_branch
        %230 = sbr.rel target = $region122
      $region121: #{quant_mlp_forward.1} parent=8 // pred_region
        _
      $region122: #{quant_mlp_forward.1} parent=8 // pred_fallthru
        _
      // Predicated region
      $region123: #{quant_mlp_forward.1} parent=8 // pred_check
        _
      $region124: #{quant_mlp_forward.1} parent=8 // pred_check_branch
        %233 = sbr.rel (0) target = $region126
      $region125: #{quant_mlp_forward.1} parent=8 // pred_region
        %234 = vsyncadd %s186, 2048
      $region126: #{quant_mlp_forward.1} parent=8 // pred_fallthru
        _
      %s235 = scalar_lea.sflag [#allocation10], 5
      // Predicated region
      $region127: #{quant_mlp_forward.1} parent=8 // pred_check
        _
      $region128: #{quant_mlp_forward.1} parent=8 // pred_check_branch
        %237 = sbr.rel target = $region130
      $region129: #{quant_mlp_forward.1} parent=8 // pred_region
        // Predicated region
        $region142: #{quant_mlp_forward.1} parent=129 // pred_check
          _
        $region143: #{quant_mlp_forward.1} parent=129 // pred_check_branch
          %253 = sbr.rel (0) target = $region145
        $region144: #{quant_mlp_forward.1} parent=129 // pred_region
          %s255 = ssub.s32 2, 1
          loop: start=0, step=1, limit=1
          $region146: #{quant_mlp_forward.1} parent=144 // loop_pre_header
            _
          $region147: #{quant_mlp_forward.1} parent=144 // loop_header
            %s257 = sphi 0, %s261
            %p258 = scmp.ge.s32.totalorder %s257, 1
            %s262 = sphi %s6, %s6
            %s263 = sphi [#allocation7], [#allocation7]
          $region148: #{quant_mlp_forward.1} parent=144 // loop_header_branch
            %260 = sbr.rel (%p258) target = $region152
          $region149: #{quant_mlp_forward.1} parent=144 // loop_body
            %v264 = vld [vmem:[%s262] sm:%s255]
            %265 = vst [vmem:[%s263] sm:%s255] %v264
          $region150: #{quant_mlp_forward.1} parent=144 // loop_footer
            %s261 = sadd.s32 1, %s257
          $region151: #{quant_mlp_forward.1} parent=144 // loop_footer_branch
            %256 = sbr.rel target = $region147
          $region152: #{quant_mlp_forward.1} parent=144 // loop_exit
            _
        $region145: #{quant_mlp_forward.1} parent=129 // pred_fallthru
          _
      $region130: #{quant_mlp_forward.1} parent=8 // pred_fallthru
        _
      // Predicated region
      $region131: #{quant_mlp_forward.1} parent=8 // pred_check
        _
      $region132: #{quant_mlp_forward.1} parent=8 // pred_check_branch
        %239 = sbr.rel (0) target = $region134
      $region133: #{quant_mlp_forward.1} parent=8 // pred_region
        %s241 = ssub.s32 2, 1
        loop: start=0, step=1, limit=1
        $region135: #{quant_mlp_forward.1} parent=133 // loop_pre_header
          _
        $region136: #{quant_mlp_forward.1} parent=133 // loop_header
          %s243 = sphi 0, %s247
          %p244 = scmp.ge.s32.totalorder %s243, 1
          %s248 = sphi %s6, %s6
          %s249 = sphi [#allocation7], [#allocation7]
        $region137: #{quant_mlp_forward.1} parent=133 // loop_header_branch
          %246 = sbr.rel (%p244) target = $region141
        $region138: #{quant_mlp_forward.1} parent=133 // loop_body
          %v250 = vld [vmem:[%s248] sm:%s241]
          %251 = vst [vmem:[%s249] sm:%s241] %v250
        $region139: #{quant_mlp_forward.1} parent=133 // loop_footer
          %s247 = sadd.s32 1, %s243
        $region140: #{quant_mlp_forward.1} parent=133 // loop_footer_branch
          %242 = sbr.rel target = $region136
        $region141: #{quant_mlp_forward.1} parent=133 // loop_exit
          _
      $region134: #{quant_mlp_forward.1} parent=8 // pred_fallthru
        _
      // Predicated region
      $region153: #{quant_mlp_forward.1} parent=8 // pred_check
        _
      $region154: #{quant_mlp_forward.1} parent=8 // pred_check_branch
        %268 = sbr.rel (0) target = $region156
      $region155: #{quant_mlp_forward.1} parent=8 // pred_region
        %269 = vsyncadd %s235, 16
      $region156: #{quant_mlp_forward.1} parent=8 // pred_fallthru
        _
    $region9: #{quant_mlp_forward.1} parent=1 // pred_fallthru
      _
    %v270 = vld [vmem:[%s0] sm:$0xff]
    // Predicated region
    $region157: #{quant_mlp_forward.1} parent=1 // pred_check
      %p271 = pneg %p15
    $region158: #{quant_mlp_forward.1} parent=1 // pred_check_branch
      %273 = sbr.rel (%p271) target = $region160
    $region159: #{quant_mlp_forward.1} parent=1 // pred_region
      %s274 = smul.u32 128, 1
      %s275 = sshll.u32 %s274, 4
      %276 = dma.done [#allocation10], %s275
      %s277 = scalar_lea.sflag [#allocation10], 1
      %s278 = smul.u32 1, 1
      %s279 = sshll.u32 %s278, 4
      %280 = dma.done %s277, %s279
    $region160: #{quant_mlp_forward.1} parent=1 // pred_fallthru
      _
    %v281 = vld [vmem:[#allocation2] sm:$0xff]
    %v282 = vld [vmem:[#allocation2 + $0x8] sm:$0xff]
    %v283 = vld [vmem:[#allocation2 + $0x10] sm:$0xff]
    %v284 = vld [vmem:[#allocation2 + $0x18] sm:$0xff]
    %v285 = vld [vmem:[#allocation2 + $0x20] sm:$0xff]
    %v286 = vld [vmem:[#allocation2 + $0x28] sm:$0xff]
    %v287 = vld [vmem:[#allocation2 + $0x30] sm:$0xff]
    %v288 = vld [vmem:[#allocation2 + $0x38] sm:$0xff]
    %v289 = vld [vmem:[#allocation2 + $0x40] sm:$0xff]
    %v290 = vld [vmem:[#allocation2 + $0x48] sm:$0xff]
    %v291 = vld [vmem:[#allocation2 + $0x50] sm:$0xff]
    %v292 = vld [vmem:[#allocation2 + $0x58] sm:$0xff]
    %v293 = vld [vmem:[#allocation2 + $0x60] sm:$0xff]
    %v294 = vld [vmem:[#allocation2 + $0x68] sm:$0xff]
    %v295 = vld [vmem:[#allocation2 + $0x70] sm:$0xff]
    %v296 = vld [vmem:[#allocation2 + $0x78] sm:$0xff]
    %v297 = vld [vmem:[#allocation3] sm:$0x1]
    %v299 = vperm.slane %v297, 0
    %301 = vmatpush.msra.mxu0 %v296
    %302 = vmatpush.msra.mxu0 %v295
    %303 = vmatpush.msra.mxu0 %v294
    %304 = vmatpush.msra.mxu0 %v293
    %305 = vmatpush.msra.mxu0 %v292
    %306 = vmatpush.msra.mxu0 %v291
    %307 = vmatpush.msra.mxu0 %v290
    %308 = vmatpush.msra.mxu0 %v289
    %309 = vmatpush.msra.mxu0 %v288
    %310 = vmatpush.msra.mxu0 %v287
    %311 = vmatpush.msra.mxu0 %v286
    %312 = vmatpush.msra.mxu0 %v285
    %313 = vmatpush.msra.mxu0 %v284
    %314 = vmatpush.msra.mxu0 %v283
    %315 = vmatpush.msra.mxu0 %v282
    %316 = vmatpush.msra.mxu0 %v281
    %317 = vmatmul.f32.gmra.mxu0 %v270
    %v318 = vpop.f32.mrf.mxu0
    %v319 = vadd.f32 %v299, %v318
    %320 = vdwg.mxu0
    %v321 = vmax.f32 %v319, 0.0
    %322 = vst [vmem:[#allocation8] sm:$0xff] %v321
    %v323 = vld [vmem:[#allocation8] sm:$0xff]
    // Predicated region
    $region161: #{quant_mlp_forward.1} parent=1 // pred_check
      %p324 = pneg %p15
    $region162: #{quant_mlp_forward.1} parent=1 // pred_check_branch
      %326 = sbr.rel (%p324) target = $region164
    $region163: #{quant_mlp_forward.1} parent=1 // pred_region
      %s327 = scalar_lea.sflag [#allocation10], 2
      %s328 = smul.u32 128, 1
      %s329 = sshll.u32 %s328, 4
      %330 = dma.done %s327, %s329
      %s331 = scalar_lea.sflag [#allocation10], 3
      %s332 = smul.u32 1, 1
      %s333 = sshll.u32 %s332, 4
      %334 = dma.done %s331, %s333
    $region164: #{quant_mlp_forward.1} parent=1 // pred_fallthru
      _
    %v335 = vld [vmem:[#allocation4] sm:$0xff]
    %v336 = vld [vmem:[#allocation4 + $0x8] sm:$0xff]
    %v337 = vld [vmem:[#allocation4 + $0x10] sm:$0xff]
    %v338 = vld [vmem:[#allocation4 + $0x18] sm:$0xff]
    %v339 = vld [vmem:[#allocation4 + $0x20] sm:$0xff]
    %v340 = vld [vmem:[#allocation4 + $0x28] sm:$0xff]
    %v341 = vld [vmem:[#allocation4 + $0x30] sm:$0xff]
    %v342 = vld [vmem:[#allocation4 + $0x38] sm:$0xff]
    %v343 = vld [vmem:[#allocation4 + $0x40] sm:$0xff]
    %v344 = vld [vmem:[#allocation4 + $0x48] sm:$0xff]
    %v345 = vld [vmem:[#allocation4 + $0x50] sm:$0xff]
    %v346 = vld [vmem:[#allocation4 + $0x58] sm:$0xff]
    %v347 = vld [vmem:[#allocation4 + $0x60] sm:$0xff]
    %v348 = vld [vmem:[#allocation4 + $0x68] sm:$0xff]
    %v349 = vld [vmem:[#allocation4 + $0x70] sm:$0xff]
    %v350 = vld [vmem:[#allocation4 + $0x78] sm:$0xff]
    %v351 = vld [vmem:[#allocation5] sm:$0x1]
    %v353 = vperm.slane %v351, 0
    %355 = vmatpush.msra.mxu0 %v350
    %356 = vmatpush.msra.mxu0 %v349
    %357 = vmatpush.msra.mxu0 %v348
    %358 = vmatpush.msra.mxu0 %v347
    %359 = vmatpush.msra.mxu0 %v346
    %360 = vmatpush.msra.mxu0 %v345
    %361 = vmatpush.msra.mxu0 %v344
    %362 = vmatpush.msra.mxu0 %v343
    %363 = vmatpush.msra.mxu0 %v342
    %364 = vmatpush.msra.mxu0 %v341
    %365 = vmatpush.msra.mxu0 %v340
    %366 = vmatpush.msra.mxu0 %v339
    %367 = vmatpush.msra.mxu0 %v338
    %368 = vmatpush.msra.mxu0 %v337
    %369 = vmatpush.msra.mxu0 %v336
    %370 = vmatpush.msra.mxu0 %v335
    %371 = vmatmul.f32.gmra.mxu0 %v323
    %v372 = vpop.f32.mrf.mxu0
    %v373 = vadd.f32 %v353, %v372
    %374 = vdwg.mxu0
    %v375 = vmax.f32 %v373, 0.0
    %376 = vst [vmem:[#allocation9] sm:$0xff] %v375
    %v377 = vld [vmem:[#allocation9] sm:$0xff]
    // Predicated region
    $region165: #{quant_mlp_forward.1} parent=1 // pred_check
      %p378 = pneg %p15
    $region166: #{quant_mlp_forward.1} parent=1 // pred_check_branch
      %380 = sbr.rel (%p378) target = $region168
    $region167: #{quant_mlp_forward.1} parent=1 // pred_region
      %s381 = scalar_lea.sflag [#allocation10], 4
      %s382 = smul.u32 128, 1
      %s383 = sshll.u32 %s382, 4
      %384 = dma.done %s381, %s383
      %s385 = scalar_lea.sflag [#allocation10], 5
      %s386 = smul.u32 1, 1
      %s387 = sshll.u32 %s386, 4
      %388 = dma.done %s385, %s387
    $region168: #{quant_mlp_forward.1} parent=1 // pred_fallthru
      _
    %v389 = vld [vmem:[#allocation6] sm:$0xff]
    %v390 = vld [vmem:[#allocation6 + $0x8] sm:$0xff]
    %v391 = vld [vmem:[#allocation6 + $0x10] sm:$0xff]
    %v392 = vld [vmem:[#allocation6 + $0x18] sm:$0xff]
    %v393 = vld [vmem:[#allocation6 + $0x20] sm:$0xff]
    %v394 = vld [vmem:[#allocation6 + $0x28] sm:$0xff]
    %v395 = vld [vmem:[#allocation6 + $0x30] sm:$0xff]
    %v396 = vld [vmem:[#allocation6 + $0x38] sm:$0xff]
    %v397 = vld [vmem:[#allocation6 + $0x40] sm:$0xff]
    %v398 = vld [vmem:[#allocation6 + $0x48] sm:$0xff]
    %v399 = vld [vmem:[#allocation6 + $0x50] sm:$0xff]
    %v400 = vld [vmem:[#allocation6 + $0x58] sm:$0xff]
    %v401 = vld [vmem:[#allocation6 + $0x60] sm:$0xff]
    %v402 = vld [vmem:[#allocation6 + $0x68] sm:$0xff]
    %v403 = vld [vmem:[#allocation6 + $0x70] sm:$0xff]
    %v404 = vld [vmem:[#allocation6 + $0x78] sm:$0xff]
    %v405 = vld [vmem:[#allocation7] sm:$0x1]
    %v407 = vperm.slane %v405, 0
    %409 = vmatpush.msra.mxu0 %v404
    %410 = vmatpush.msra.mxu0 %v403
    %411 = vmatpush.msra.mxu0 %v402
    %412 = vmatpush.msra.mxu0 %v401
    %413 = vmatpush.msra.mxu0 %v400
    %414 = vmatpush.msra.mxu0 %v399
    %415 = vmatpush.msra.mxu0 %v398
    %416 = vmatpush.msra.mxu0 %v397
    %417 = vmatpush.msra.mxu0 %v396
    %418 = vmatpush.msra.mxu0 %v395
    %419 = vmatpush.msra.mxu0 %v394
    %420 = vmatpush.msra.mxu0 %v393
    %421 = vmatpush.msra.mxu0 %v392
    %422 = vmatpush.msra.mxu0 %v391
    %423 = vmatpush.msra.mxu0 %v390
    %424 = vmatpush.msra.mxu0 %v389
    %425 = vmatmul.f32.gmra.mxu0 %v377
    %v426 = vpop.f32.mrf.mxu0
    %v427 = vadd.f32 %v407, %v426
    %428 = vdwg.mxu0
    %429 = vst [vmem:[#allocation11] sm:$0xff] %v427
    // Predicated region
    $region169: #{quant_mlp_forward.1} parent=1 // pred_check
      _
    $region170: #{quant_mlp_forward.1} parent=1 // pred_check_branch
      %431 = sbr.rel (0) target = $region172
    $region171: #{quant_mlp_forward.1} parent=1 // pred_region
      %433 = vsyncadd [#allocation12], 0
      %s435 = sshll.u32 [#allocation11], 4
      %s436 = int_to_ptr.vmem [resolvable:$true] %s435
      %s437 = sshll.u32 %s7, 4
      %s438 = int_to_ptr.hbm [resolvable:$true] %s437
      %440 = dma.vmem_to_hbm [thread:$0]  %s436, 128, %s438, [#allocation12]
    $region172: #{quant_mlp_forward.1} parent=1 // pred_fallthru
      _
    // Predicated region
    $region173: #{quant_mlp_forward.1} parent=1 // pred_check
      _
    $region174: #{quant_mlp_forward.1} parent=1 // pred_check_branch
      %442 = sbr.rel (0) target = $region176
    $region175: #{quant_mlp_forward.1} parent=1 // pred_region
      %444 = dma.done [#allocation12], 128
    $region176: #{quant_mlp_forward.1} parent=1 // pred_fallthru
      _
    %445 = vsyncpa [#allocation12], 1
  %446 = vsyncmov [#allocation10]
  %s447 = vpop.sfrf %446
  %p448 = scmp.eq.s32.totalorder %s447, 0
  %p449 = pneg %p448
  %451 = shalt.err (%p449)
  %s452 = scalar_lea.sflag [#allocation10], 1
  %453 = vsyncmov %s452
  %s454 = vpop.sfrf %453
  %p455 = scmp.eq.s32.totalorder %s454, 0
  %p456 = pneg %p455
  %458 = shalt.err (%p456)
  %s459 = scalar_lea.sflag [#allocation10], 2
  %460 = vsyncmov %s459
  %s461 = vpop.sfrf %460
  %p462 = scmp.eq.s32.totalorder %s461, 0
  %p463 = pneg %p462
  %465 = shalt.err (%p463)
  %s466 = scalar_lea.sflag [#allocation10], 3
  %467 = vsyncmov %s466
  %s468 = vpop.sfrf %467
  %p469 = scmp.eq.s32.totalorder %s468, 0
  %p470 = pneg %p469
  %472 = shalt.err (%p470)
  %s473 = scalar_lea.sflag [#allocation10], 4
  %474 = vsyncmov %s473
  %s475 = vpop.sfrf %474
  %p476 = scmp.eq.s32.totalorder %s475, 0
  %p477 = pneg %p476
  %479 = shalt.err (%p477)
  %s480 = scalar_lea.sflag [#allocation10], 5
  %481 = vsyncmov %s480
  %s482 = vpop.sfrf %481
  %p483 = scmp.eq.s32.totalorder %s482, 0
  %p484 = pneg %p483
  %486 = shalt.err (%p484)

</llo_original>
